<compile_context>
chip_gen: v6e
topology: v6e:2x2x1
jax: 0.10.0
libtpu: 0.0.40
codegen_flags: <defaults>
</compile_context>

<pallas_src>
import functools
import types

import numpy as np
import jax
import jax.numpy as jnp
from jax.experimental import pallas as pl
from jax.experimental.pallas import tpu as pltpu

EMB_DIM = 32
NUM_LAYER = 2
UNIFORMITY_DIM = 16
NUM_ATOM_TYPE = 120
NUM_CHIRALITY_TAG = 3
NUM_BOND_TYPE = 6
NUM_BOND_DIRECTION = 3
BN_EPS = 1e-5


# ----------------------------- fused Pallas kernel ----------------------------

def fused_gnn_kernel(x_ref, adj_ref, ee_ref, w1_ref, w2_ref, bnp_ref,
                     pool_ref, wu_ref, node_out_ref, loss_out_ref, *, t, num_layer):
    h = x_ref[...]                      # (N, D)
    A = adj_ref[...]                    # (N, N) adjacency (dst <- src counts, + self loops)

    for l in range(num_layer):          # unrolled; everything stays VMEM-resident
        w1 = w1_ref[l]                  # (D, 2D)
        w2 = w2_ref[l]                  # (2D, D)
        bnp = bnp_ref[l]                # (4, 2D) pack: [b1 | b2,0 | gamma,0 | beta,0]
        b1 = bnp[0:1, :]                # (1, 2D)
        b2 = bnp[1:2, :EMB_DIM]         # (1, D)
        gamma = bnp[2:3, :EMB_DIM]      # (1, D)
        beta = bnp[3:4, :EMB_DIM]       # (1, D)

        # GIN aggregation: sum_{e: dst==i} (h[src[e]] + edge_emb[e])
        #   == (A @ h)[i] + ee_agg[l][i]   (ee_agg precomputed host-side, h-independent)
        aggr = jnp.dot(A, h, preferred_element_type=jnp.float32) + ee_ref[l]

        # GIN MLP: Linear(D, 2D) -> ReLU -> Linear(2D, D)
        z = jnp.maximum(jnp.dot(aggr, w1, preferred_element_type=jnp.float32) + b1, 0.0)
        h2 = jnp.dot(z, w2, preferred_element_type=jnp.float32) + b2

        # BatchNorm1d (training mode): batch stats over ALL nodes, biased var, eps=1e-5.
        # Scale folded into a (1, D) row before broadcasting (saves an (N,D) multiply).
        mean = jnp.mean(h2, axis=0, keepdims=True)
        var = jnp.mean((h2 - mean) ** 2, axis=0, keepdims=True)
        s = gamma * jax.lax.rsqrt(var + BN_EPS)
        h = (h2 - mean) * s + beta
        if l != num_layer - 1:          # ReLU for all but the last layer (dropout: ratio=0)
            h = jnp.maximum(h, 0.0)

    # JK == 'last'.  (Lane-dense (N/4,128) output packing deferred to the batched
    # version; at N=16 the writeback is 2 KB and launch-bound.)
    node_out_ref[...] = h

    # ---- uniformity loss, fused in the same call ----
    # global_mean_pool over keep_nodes expressed as a (G, N) matmul (zero cols elsewhere)
    ge = jnp.dot(pool_ref[...], h, preferred_element_type=jnp.float32)
    # uniformity_layer (no bias) + ReLU
    eb = jnp.maximum(jnp.dot(ge, wu_ref[...], preferred_element_type=jnp.float32), 0.0)
    # F.normalize (L2, eps=1e-12); divide rides the EUP via approximate reciprocal
    nrm = jnp.sqrt(jnp.sum(eb * eb, axis=1, keepdims=True))
    ebn = eb * pl.reciprocal(jnp.maximum(nrm, 1e-12), approx=True)
    # Gram matrix via dot_general (contract last dim of both operands)
    sim = jax.lax.dot_general(ebn, ebn, (((1,), (1,)), ((), ())),
                              preferred_element_type=jnp.float32)
    loss = jnp.log(jnp.mean(jnp.exp(2.0 * t * (sim - 1.0))))
    loss_out_ref[...] = jnp.broadcast_to(loss, (1, 1))


def fused_gnn(x0, adj, ee_agg, w1s, w2s, bn_pack, pool, wu_t, t):
    """One pallas_call: NUM_LAYER GIN layers + BN + uniformity loss, VMEM-resident."""
    N, D = x0.shape
    args = (x0, adj, ee_agg, w1s, w2s, bn_pack, pool, wu_t)
    in_specs = [pl.BlockSpec(a.shape, (lambda i, _n=a.ndim: (0,) * _n)) for a in args]

    node_rep, loss = pl.pallas_call(
        functools.partial(fused_gnn_kernel, t=float(t), num_layer=NUM_LAYER),
        grid=(1,),
        in_specs=in_specs,
        out_specs=[pl.BlockSpec((N, D), lambda i: (0, 0)),
                   pl.BlockSpec((1, 1), lambda i: (0, 0))],
        out_shape=(jax.ShapeDtypeStruct((N, D), jnp.float32),
                   jax.ShapeDtypeStruct((1, 1), jnp.float32)),
        compiler_params=pltpu.CompilerParams(dimension_semantics=("arbitrary",)),
    )(*args)
    # VMEM note: the resident footprint is now O(N^2 + L*N*D); for batched graphs
    # (N ~ few thousand) this still fits v7x's 64 MiB, unlike the old O(E*N) one-hots.
    return node_rep, loss[0, 0]


# ----------------------------- parameters -------------------------------------

def init_params(key):
    ks = jax.random.split(key, 16)

    def xavier(k, shape):
        bound = float(np.sqrt(6.0 / (shape[0] + shape[1])))
        return jax.random.uniform(k, shape, jnp.float32, -bound, bound)

    params = {
        "x_emb1": xavier(ks[0], (NUM_ATOM_TYPE, EMB_DIM)),
        "x_emb2": xavier(ks[1], (NUM_CHIRALITY_TAG, EMB_DIM)),
        # uniformity_layer weight, stored pre-transposed: (emb_dim, uniformity_dim)
        "wu_t": xavier(ks[2], (EMB_DIM, UNIFORMITY_DIM)),
        "layers": [],
    }
    for l in range(NUM_LAYER):
        kl = jax.random.split(ks[3 + l], 6)
        params["layers"].append(dict(
            w1=xavier(kl[0], (EMB_DIM, 2 * EMB_DIM)),
            b1=jax.random.uniform(kl[1], (2 * EMB_DIM,), jnp.float32, -0.1, 0.1),
            w2=xavier(kl[2], (2 * EMB_DIM, EMB_DIM)),
            b2=jax.random.uniform(kl[3], (EMB_DIM,), jnp.float32, -0.1, 0.1),
            ee1=xavier(kl[4], (NUM_BOND_TYPE, EMB_DIM)),
            ee2=xavier(kl[5], (NUM_BOND_DIRECTION, EMB_DIM)),
            gamma=jnp.ones((EMB_DIM,), jnp.float32),   # BatchNorm1d default init
            beta=jnp.zeros((EMB_DIM,), jnp.float32),
        ))
    return params


def pack_layer_params(layers):
    """Stack per-layer weights into a few slabs to minimize DMA descriptors."""
    w1s = jnp.stack([lp["w1"] for lp in layers])                       # (L, D, 2D)
    w2s = jnp.stack([lp["w2"] for lp in layers])                       # (L, 2D, D)
    rows = []
    for lp in layers:
        pad = lambda v: jnp.pad(v, (0, 2 * EMB_DIM - v.shape[0]))
        rows.append(jnp.stack([lp["b1"], pad(lp["b2"]), pad(lp["gamma"]), pad(lp["beta"])]))
    bn_pack = jnp.stack(rows)                                          # (L, 4, 2D)
    return w1s, w2s, bn_pack


# ----------------------------- pure-JAX reference -----------------------------
# Uses the ORIGINAL per-edge gather / segment-sum formulation, so it validates the
# adjacency-matmul restructuring inside the kernel against the module's semantics.

def reference_forward(x0, src_idx, dst_idx, edge_embs, layers, pool, wu_t, t, num_nodes):
    h = x0
    for l in range(NUM_LAYER):
        lp = layers[l]
        msg = jnp.take(h, src_idx, axis=0) + edge_embs[l]              # x_j + edge_attr
        aggr = jax.ops.segment_sum(msg, dst_idx, num_segments=num_nodes)
        z = jnp.maximum(aggr @ lp["w1"] + lp["b1"][None, :], 0.0)
        h2 = z @ lp["w2"] + lp["b2"][None, :]
        mean = jnp.mean(h2, axis=0, keepdims=True)
        var = jnp.mean((h2 - mean) ** 2, axis=0, keepdims=True)
        h = (h2 - mean) * jax.lax.rsqrt(var + BN_EPS) * lp["gamma"][None, :] + lp["beta"][None, :]
        if l != NUM_LAYER - 1:
            h = jnp.maximum(h, 0.0)
    ge = pool @ h
    eb = jnp.maximum(ge @ wu_t, 0.0)
    nrm = jnp.sqrt(jnp.sum(eb * eb, axis=1, keepdims=True))
    ebn = eb / jnp.maximum(nrm, 1e-12)
    sim = ebn @ ebn.T
    return h, jnp.log(jnp.mean(jnp.exp(2.0 * t * (sim - 1.0))))


# ----------------------------- forward (glue + fused kernel) ------------------

def gnn_forward(params, batch, mask_prob, alpha_adv, args, use_pallas=True):
    x_int = np.asarray(batch["x"])
    edge_index = np.asarray(batch["edge_index"])
    edge_attr = np.asarray(batch["edge_attr"])
    batch_vec = np.asarray(batch["batch"])
    masked_atom_indices = np.asarray(batch["masked_atom_indices"])
    num_nodes = x_int.shape[0]

    # ---- masking glue (data-dependent shapes: host-side, mirrors the PyTorch code) ----
    mask_num_nodes = len(masked_atom_indices)
    num_random_mask_nodes = int(mask_num_nodes * (1.0 - alpha_adv))
    random_mask_nodes = masked_atom_indices[:num_random_mask_nodes]
    random_keep_nodes = masked_atom_indices[num_random_mask_nodes:]
    mask_ = np.asarray(mask_prob)[:, 1].astype(np.float32).copy()
    perm_adv = np.random.default_rng(0).permutation(num_nodes)  # deterministic randperm
    adv_keep_token = perm_adv[:int(num_nodes * (1.0 - alpha_adv))]
    mask_[adv_keep_token] = 1.0
    Mask_ = mask_.reshape(-1, 1)
    adv_keep_nodes = np.nonzero(mask_)[0]
    adv_mask_nodes = np.nonzero(1.0 - mask_)[0]
    mask_nodes = np.unique(np.concatenate([random_mask_nodes, adv_mask_nodes]))
    keep_nodes = np.intersect1d(random_keep_nodes, adv_keep_nodes)

    # node embedding + masking (args.replace_rate == 0 path)
    x_emb = params["x_emb1"][x_int[:, 0]] + params["x_emb2"][x_int[:, 1]]
    out_x = x_emb * jnp.asarray(Mask_)
    mask_token = params["x_emb1"][119] + params["x_emb2"][0]
    out_x = out_x.at[jnp.asarray(mask_nodes)].set(mask_token)
    x0 = out_x.astype(jnp.float32)
    # TODO(synk): args.replace_rate > 0 and args.mask_edge branches are not exercised here.

    # ---- self loops + host-side adjacency / edge-aggregate precompute ----
    sl = np.arange(num_nodes)
    ei = np.concatenate([edge_index, np.stack([sl, sl])], axis=1)       # (2, E+N)
    self_loop_attr = np.zeros((num_nodes, 2), dtype=edge_attr.dtype)
    self_loop_attr[:, 0] = 4
    ea = np.concatenate([edge_attr, self_loop_attr], axis=0)            # (E+N, 2)

    adj_np = np.zeros((num_nodes, num_nodes), dtype=np.float32)         # A[dst, src] += 1
    np.add.at(adj_np, (ei[1], ei[0]), 1.0)
    adj = jnp.asarray(adj_np)
    src_idx = jnp.asarray(ei[0].astype(np.int32))
    dst_idx = jnp.asarray(ei[1].astype(np.int32))

    # per-layer edge embeddings + their destination scatter-add (h-independent)
    edge_embs, ee_agg = [], []
    for l in range(NUM_LAYER):
        lp = params["layers"][l]
        ee = (lp["ee1"][ea[:, 0]] + lp["ee2"][ea[:, 1]]).astype(jnp.float32)
        edge_embs.append(ee)
        ee_agg.append(jax.ops.segment_sum(ee, dst_idx, num_segments=num_nodes))
    ee_agg = jnp.stack(ee_agg)                                          # (L, N, D)

    # uniformity pooling matrix over the FULL node set (zero columns for non-keep nodes)
    have_keep = keep_nodes.size > 0
    if have_keep:
        bk = batch_vec[keep_nodes]
        num_graphs = int(bk.max()) + 1
        pool_np = np.zeros((num_graphs, num_nodes), dtype=np.float32)
        pool_np[bk, keep_nodes] = 1.0
        counts = np.maximum(pool_np.sum(axis=1, keepdims=True), 1.0)
        pool_np = (pool_np / counts).astype(np.float32)  # global_mean_pool as a matmul
    else:
        pool_np = np.zeros((1, num_nodes), dtype=np.float32)
    pool = jnp.asarray(pool_np)
    lamda = float(args.lamda * (1.0 - alpha_adv))

    if use_pallas:
        w1s, w2s, bn_pack = pack_layer_params(params["layers"])
        node_representation, u_loss = fused_gnn(
            x0, adj, ee_agg, w1s, w2s, bn_pack, pool, params["wu_t"], lamda)
    else:
        node_representation, u_loss = reference_forward(
            x0, src_idx, dst_idx, edge_embs, params["layers"], pool,
            params["wu_t"], lamda, num_nodes)

    if not have_keep:
        # Matches PyTorch: graphs with no keep_nodes produce u_loss = 0.
        u_loss = jnp.zeros((), jnp.float32)
    return node_representation, u_loss


# ----------------------------- main --------------------------------------------

if __name__ == "__main__":
    key = jax.random.PRNGKey(0)
    kp, kx, ke, ka, km = jax.random.split(key, 5)
    params = init_params(kp)

    N, E = 16, 24
    x_int = np.stack([
        np.array(jax.random.randint(kx, (N,), 0, NUM_ATOM_TYPE)),
        np.array(jax.random.randint(jax.random.fold_in(kx, 1), (N,), 0, NUM_CHIRALITY_TAG)),
    ], axis=1).astype(np.int32)
    edge_index = np.array(jax.random.randint(ke, (2, E), 0, N), dtype=np.int32)
    edge_attr = np.stack([
        np.array(jax.random.randint(ka, (E,), 0, 4)),
        np.array(jax.random.randint(jax.random.fold_in(ka, 1), (E,), 0, NUM_BOND_DIRECTION)),
    ], axis=1).astype(np.int32)
    batch_vec = np.array([0] * 8 + [1] * 8, dtype=np.int32)
    masked_atom_indices = np.array([1, 3, 12, 5, 8, 14], dtype=np.int32)

    mask_col1 = np.array(jax.random.bernoulli(km, 0.6, (N,)), dtype=np.float32)
    mask_col1[[5, 8, 14]] = 1.0   # guarantee keep_nodes is non-empty (both graphs)
    mask_prob = np.stack([1.0 - mask_col1, mask_col1], axis=1).astype(np.float32)

    batch = dict(x=x_int, edge_index=edge_index, edge_attr=edge_attr,
                 batch=batch_vec, masked_atom_indices=masked_atom_indices)
    fwd_args = types.SimpleNamespace(replace_rate=0.0, mask_edge=False,
                                     drop_edge_rate=0.0, pooling="mean", lamda=1.0)
    alpha_adv = 0.5

    node_rep, u_loss = gnn_forward(params, batch, mask_prob, alpha_adv, fwd_args,
                                   use_pallas=True)
    node_rep = jax.block_until_ready(node_rep)
    u_loss = jax.block_until_ready(u_loss)

    # pure-JAX reference using the original gather / segment-sum message passing
    node_rep_ref, u_loss_ref = gnn_forward(params, batch, mask_prob, alpha_adv, fwd_args,
                                           use_pallas=False)
    assert np.allclose(np.asarray(node_rep), np.asarray(node_rep_ref),
                       rtol=1e-4, atol=1e-4), "node representation mismatch"
    # loss tolerance slightly looser: the kernel's L2-normalize uses the EUP
    # approximate reciprocal (pl.reciprocal(approx=True)).
    assert np.allclose(float(u_loss), float(u_loss_ref), rtol=2e-3, atol=2e-3), \
        "uniformity loss mismatch"

    print("KERNEL_OK")
</pallas_src>

<mosaic_0001>
module attributes {stable_mosaic.version = 11 : i64} {
  func.func @fused_gnn_kernel(%arg0: i32, %arg1: memref<16x32xf32, #tpu.memory_space<vmem>>, %arg2: memref<16x16xf32, #tpu.memory_space<vmem>>, %arg3: memref<2x16x32xf32, #tpu.memory_space<vmem>>, %arg4: memref<2x32x64xf32, #tpu.memory_space<vmem>>, %arg5: memref<2x64x32xf32, #tpu.memory_space<vmem>>, %arg6: memref<2x4x64xf32, #tpu.memory_space<vmem>>, %arg7: memref<2x16xf32, #tpu.memory_space<vmem>>, %arg8: memref<32x16xf32, #tpu.memory_space<vmem>>, %arg9: memref<16x32xf32, #tpu.memory_space<vmem>>, %arg10: memref<1x1xf32, #tpu.memory_space<vmem>>) attributes {dimension_semantics = [#tpu.dimension_semantics<arbitrary>], iteration_bounds = array<i64: 1>, scalar_prefetch = 0 : i64, scratch_operands = 0 : i64, tpu.core_type = #tpu.core_type<tc>, window_params = [{pipeline_mode = #tpu.pipeline_mode<synchronous>, transform_indices = @transform_0, window_bounds = array<i64: 16, 32>}, {pipeline_mode = #tpu.pipeline_mode<synchronous>, transform_indices = @transform_1, window_bounds = array<i64: 16, 16>}, {pipeline_mode = #tpu.pipeline_mode<synchronous>, transform_indices = @transform_2, window_bounds = array<i64: 2, 16, 32>}, {pipeline_mode = #tpu.pipeline_mode<synchronous>, transform_indices = @transform_3, window_bounds = array<i64: 2, 32, 64>}, {pipeline_mode = #tpu.pipeline_mode<synchronous>, transform_indices = @transform_4, window_bounds = array<i64: 2, 64, 32>}, {pipeline_mode = #tpu.pipeline_mode<synchronous>, transform_indices = @transform_5, window_bounds = array<i64: 2, 4, 64>}, {pipeline_mode = #tpu.pipeline_mode<synchronous>, transform_indices = @transform_6, window_bounds = array<i64: 2, 16>}, {pipeline_mode = #tpu.pipeline_mode<synchronous>, transform_indices = @transform_7, window_bounds = array<i64: 32, 16>}, {pipeline_mode = #tpu.pipeline_mode<synchronous>, transform_indices = @transform_8, window_bounds = array<i64: 16, 32>}, {pipeline_mode = #tpu.pipeline_mode<synchronous>, transform_indices = @transform_9, window_bounds = array<i64: 1, 1>}]} {
    %c0 = arith.constant 0 : index
    %c0_0 = arith.constant 0 : index
    %0 = vector.load %arg1[%c0, %c0_0] : memref<16x32xf32, #tpu.memory_space<vmem>>, vector<16x32xf32>
    %c0_1 = arith.constant 0 : index
    %c0_2 = arith.constant 0 : index
    %1 = vector.load %arg2[%c0_1, %c0_2] : memref<16x16xf32, #tpu.memory_space<vmem>>, vector<16x16xf32>
    %c0_3 = arith.constant 0 : index
    %c0_4 = arith.constant 0 : index
    %c0_5 = arith.constant 0 : index
    %2 = vector.load %arg4[%c0_3, %c0_4, %c0_5] : memref<2x32x64xf32, #tpu.memory_space<vmem>>, vector<1x32x64xf32>
    %3 = vector.shape_cast %2 : vector<1x32x64xf32> to vector<32x64xf32>
    %c0_6 = arith.constant 0 : index
    %c0_7 = arith.constant 0 : index
    %c0_8 = arith.constant 0 : index
    %4 = vector.load %arg5[%c0_6, %c0_7, %c0_8] : memref<2x64x32xf32, #tpu.memory_space<vmem>>, vector<1x64x32xf32>
    %5 = vector.shape_cast %4 : vector<1x64x32xf32> to vector<64x32xf32>
    %c0_9 = arith.constant 0 : index
    %c0_10 = arith.constant 0 : index
    %c0_11 = arith.constant 0 : index
    %6 = vector.load %arg6[%c0_9, %c0_10, %c0_11] : memref<2x4x64xf32, #tpu.memory_space<vmem>>, vector<1x4x64xf32>
    %7 = vector.shape_cast %6 : vector<1x4x64xf32> to vector<4x64xf32>
    %8 = vector.extract_strided_slice %7 {offsets = [0, 0], sizes = [1, 64], strides = [1, 1]} : vector<4x64xf32> to vector<1x64xf32>
    %9 = vector.extract_strided_slice %7 {offsets = [1, 0], sizes = [1, 32], strides = [1, 1]} : vector<4x64xf32> to vector<1x32xf32>
    %10 = vector.extract_strided_slice %7 {offsets = [2, 0], sizes = [1, 32], strides = [1, 1]} : vector<4x64xf32> to vector<1x32xf32>
    %11 = vector.extract_strided_slice %7 {offsets = [3, 0], sizes = [1, 32], strides = [1, 1]} : vector<4x64xf32> to vector<1x32xf32>
    %cst = arith.constant dense<0.000000e+00> : vector<16x32xf32>
    %12 = tpu.matmul %1, %0, %cst {dimension_numbers = #tpu.dot_dimension_numbers<[1], [0], [0], [1], [0, 0, 1, 1], [], []>} : vector<16x16xf32>, vector<16x32xf32>, vector<16x32xf32> -> vector<16x32xf32>
    %c0_12 = arith.constant 0 : index
    %c0_13 = arith.constant 0 : index
    %c0_14 = arith.constant 0 : index
    %13 = vector.load %arg3[%c0_12, %c0_13, %c0_14] : memref<2x16x32xf32, #tpu.memory_space<vmem>>, vector<1x16x32xf32>
    %14 = vector.shape_cast %13 : vector<1x16x32xf32> to vector<16x32xf32>
    %15 = arith.addf %12, %14 : vector<16x32xf32>
    %cst_15 = arith.constant dense<0.000000e+00> : vector<16x64xf32>
    %16 = tpu.matmul %15, %3, %cst_15 {dimension_numbers = #tpu.dot_dimension_numbers<[1], [0], [0], [1], [0, 0, 1, 1], [], []>} : vector<16x32xf32>, vector<32x64xf32>, vector<16x64xf32> -> vector<16x64xf32>
    %17 = vector.broadcast %8 : vector<1x64xf32> to vector<16x64xf32>
    %18 = arith.addf %16, %17 : vector<16x64xf32>
    %cst_16 = arith.constant 0.000000e+00 : f32
    %19 = vector.broadcast %cst_16 : f32 to vector<16x64xf32>
    %20 = arith.maximumf %18, %19 : vector<16x64xf32>
    %cst_17 = arith.constant dense<0.000000e+00> : vector<16x32xf32>
    %21 = tpu.matmul %20, %5, %cst_17 {dimension_numbers = #tpu.dot_dimension_numbers<[1], [0], [0], [1], [0, 0, 1, 1], [], []>} : vector<16x64xf32>, vector<64x32xf32>, vector<16x32xf32> -> vector<16x32xf32>
    %22 = vector.broadcast %9 : vector<1x32xf32> to vector<16x32xf32>
    %23 = arith.addf %21, %22 : vector<16x32xf32>
    %cst_18 = arith.constant dense<0.000000e+00> : vector<32xf32>
    %24 = vector.multi_reduction <add>, %23, %cst_18 [0] : vector<16x32xf32> to vector<32xf32>
    %25 = vector.shape_cast %24 : vector<32xf32> to vector<1x32xf32>
    %cst_19 = arith.constant 1.600000e+01 : f32
    %26 = vector.broadcast %cst_19 : f32 to vector<1x32xf32>
    %27 = arith.divf %25, %26 : vector<1x32xf32>
    %28 = vector.broadcast %27 : vector<1x32xf32> to vector<16x32xf32>
    %29 = arith.subf %23, %28 : vector<16x32xf32>
    %30 = arith.mulf %29, %29 : vector<16x32xf32>
    %cst_20 = arith.constant dense<0.000000e+00> : vector<32xf32>
    %31 = vector.multi_reduction <add>, %30, %cst_20 [0] : vector<16x32xf32> to vector<32xf32>
    %32 = vector.shape_cast %31 : vector<32xf32> to vector<1x32xf32>
    %cst_21 = arith.constant 1.600000e+01 : f32
    %33 = vector.broadcast %cst_21 : f32 to vector<1x32xf32>
    %34 = arith.divf %32, %33 : vector<1x32xf32>
    %cst_22 = arith.constant 9.99999974E-6 : f32
    %35 = vector.broadcast %cst_22 : f32 to vector<1x32xf32>
    %36 = arith.addf %34, %35 : vector<1x32xf32>
    %37 = math.rsqrt %36 : vector<1x32xf32>
    %38 = arith.mulf %10, %37 : vector<1x32xf32>
    %39 = vector.broadcast %27 : vector<1x32xf32> to vector<16x32xf32>
    %40 = arith.subf %23, %39 : vector<16x32xf32>
    %41 = vector.broadcast %38 : vector<1x32xf32> to vector<16x32xf32>
    %42 = arith.mulf %40, %41 : vector<16x32xf32>
    %43 = vector.broadcast %11 : vector<1x32xf32> to vector<16x32xf32>
    %44 = arith.addf %42, %43 : vector<16x32xf32>
    %cst_23 = arith.constant 0.000000e+00 : f32
    %45 = vector.broadcast %cst_23 : f32 to vector<16x32xf32>
    %46 = arith.maximumf %44, %45 : vector<16x32xf32>
    %c1 = arith.constant 1 : index
    %c0_24 = arith.constant 0 : index
    %c0_25 = arith.constant 0 : index
    %47 = vector.load %arg4[%c1, %c0_24, %c0_25] : memref<2x32x64xf32, #tpu.memory_space<vmem>>, vector<1x32x64xf32>
    %48 = vector.shape_cast %47 : vector<1x32x64xf32> to vector<32x64xf32>
    %c1_26 = arith.constant 1 : index
    %c0_27 = arith.constant 0 : index
    %c0_28 = arith.constant 0 : index
    %49 = vector.load %arg5[%c1_26, %c0_27, %c0_28] : memref<2x64x32xf32, #tpu.memory_space<vmem>>, vector<1x64x32xf32>
    %50 = vector.shape_cast %49 : vector<1x64x32xf32> to vector<64x32xf32>
    %c1_29 = arith.constant 1 : index
    %c0_30 = arith.constant 0 : index
    %c0_31 = arith.constant 0 : index
    %51 = vector.load %arg6[%c1_29, %c0_30, %c0_31] : memref<2x4x64xf32, #tpu.memory_space<vmem>>, vector<1x4x64xf32>
    %52 = vector.shape_cast %51 : vector<1x4x64xf32> to vector<4x64xf32>
    %53 = vector.extract_strided_slice %52 {offsets = [0, 0], sizes = [1, 64], strides = [1, 1]} : vector<4x64xf32> to vector<1x64xf32>
    %54 = vector.extract_strided_slice %52 {offsets = [1, 0], sizes = [1, 32], strides = [1, 1]} : vector<4x64xf32> to vector<1x32xf32>
    %55 = vector.extract_strided_slice %52 {offsets = [2, 0], sizes = [1, 32], strides = [1, 1]} : vector<4x64xf32> to vector<1x32xf32>
    %56 = vector.extract_strided_slice %52 {offsets = [3, 0], sizes = [1, 32], strides = [1, 1]} : vector<4x64xf32> to vector<1x32xf32>
    %cst_32 = arith.constant dense<0.000000e+00> : vector<16x32xf32>
    %57 = tpu.matmul %1, %46, %cst_32 {dimension_numbers = #tpu.dot_dimension_numbers<[1], [0], [0], [1], [0, 0, 1, 1], [], []>} : vector<16x16xf32>, vector<16x32xf32>, vector<16x32xf32> -> vector<16x32xf32>
    %c1_33 = arith.constant 1 : index
    %c0_34 = arith.constant 0 : index
    %c0_35 = arith.constant 0 : index
    %58 = vector.load %arg3[%c1_33, %c0_34, %c0_35] : memref<2x16x32xf32, #tpu.memory_space<vmem>>, vector<1x16x32xf32>
    %59 = vector.shape_cast %58 : vector<1x16x32xf32> to vector<16x32xf32>
    %60 = arith.addf %57, %59 : vector<16x32xf32>
    %cst_36 = arith.constant dense<0.000000e+00> : vector<16x64xf32>
    %61 = tpu.matmul %60, %48, %cst_36 {dimension_numbers = #tpu.dot_dimension_numbers<[1], [0], [0], [1], [0, 0, 1, 1], [], []>} : vector<16x32xf32>, vector<32x64xf32>, vector<16x64xf32> -> vector<16x64xf32>
    %62 = vector.broadcast %53 : vector<1x64xf32> to vector<16x64xf32>
    %63 = arith.addf %61, %62 : vector<16x64xf32>
    %cst_37 = arith.constant 0.000000e+00 : f32
    %64 = vector.broadcast %cst_37 : f32 to vector<16x64xf32>
    %65 = arith.maximumf %63, %64 : vector<16x64xf32>
    %cst_38 = arith.constant dense<0.000000e+00> : vector<16x32xf32>
    %66 = tpu.matmul %65, %50, %cst_38 {dimension_numbers = #tpu.dot_dimension_numbers<[1], [0], [0], [1], [0, 0, 1, 1], [], []>} : vector<16x64xf32>, vector<64x32xf32>, vector<16x32xf32> -> vector<16x32xf32>
    %67 = vector.broadcast %54 : vector<1x32xf32> to vector<16x32xf32>
    %68 = arith.addf %66, %67 : vector<16x32xf32>
    %cst_39 = arith.constant dense<0.000000e+00> : vector<32xf32>
    %69 = vector.multi_reduction <add>, %68, %cst_39 [0] : vector<16x32xf32> to vector<32xf32>
    %70 = vector.shape_cast %69 : vector<32xf32> to vector<1x32xf32>
    %cst_40 = arith.constant 1.600000e+01 : f32
    %71 = vector.broadcast %cst_40 : f32 to vector<1x32xf32>
    %72 = arith.divf %70, %71 : vector<1x32xf32>
    %73 = vector.broadcast %72 : vector<1x32xf32> to vector<16x32xf32>
    %74 = arith.subf %68, %73 : vector<16x32xf32>
    %75 = arith.mulf %74, %74 : vector<16x32xf32>
    %cst_41 = arith.constant dense<0.000000e+00> : vector<32xf32>
    %76 = vector.multi_reduction <add>, %75, %cst_41 [0] : vector<16x32xf32> to vector<32xf32>
    %77 = vector.shape_cast %76 : vector<32xf32> to vector<1x32xf32>
    %cst_42 = arith.constant 1.600000e+01 : f32
    %78 = vector.broadcast %cst_42 : f32 to vector<1x32xf32>
    %79 = arith.divf %77, %78 : vector<1x32xf32>
    %cst_43 = arith.constant 9.99999974E-6 : f32
    %80 = vector.broadcast %cst_43 : f32 to vector<1x32xf32>
    %81 = arith.addf %79, %80 : vector<1x32xf32>
    %82 = math.rsqrt %81 : vector<1x32xf32>
    %83 = arith.mulf %55, %82 : vector<1x32xf32>
    %84 = vector.broadcast %72 : vector<1x32xf32> to vector<16x32xf32>
    %85 = arith.subf %68, %84 : vector<16x32xf32>
    %86 = vector.broadcast %83 : vector<1x32xf32> to vector<16x32xf32>
    %87 = arith.mulf %85, %86 : vector<16x32xf32>
    %88 = vector.broadcast %56 : vector<1x32xf32> to vector<16x32xf32>
    %89 = arith.addf %87, %88 : vector<16x32xf32>
    %c0_44 = arith.constant 0 : index
    %c0_45 = arith.constant 0 : index
    %90 = vector.load %arg9[%c0_44, %c0_45] : memref<16x32xf32, #tpu.memory_space<vmem>>, vector<16x32xf32>
    tpu.vector_store %arg9[%c0_44, %c0_45], %89 {strides = array<i32>} : memref<16x32xf32, #tpu.memory_space<vmem>>, vector<16x32xf32>,
    %c0_46 = arith.constant 0 : index
    %c0_47 = arith.constant 0 : index
    %91 = vector.load %arg7[%c0_46, %c0_47] : memref<2x16xf32, #tpu.memory_space<vmem>>, vector<2x16xf32>
    %cst_48 = arith.constant dense<0.000000e+00> : vector<2x32xf32>
    %92 = tpu.matmul %91, %89, %cst_48 {dimension_numbers = #tpu.dot_dimension_numbers<[1], [0], [0], [1], [0, 0, 1, 1], [], []>} : vector<2x16xf32>, vector<16x32xf32>, vector<2x32xf32> -> vector<2x32xf32>
    %c0_49 = arith.constant 0 : index
    %c0_50 = arith.constant 0 : index
    %93 = vector.load %arg8[%c0_49, %c0_50] : memref<32x16xf32, #tpu.memory_space<vmem>>, vector<32x16xf32>
    %cst_51 = arith.constant dense<0.000000e+00> : vector<2x16xf32>
    %94 = tpu.matmul %92, %93, %cst_51 {dimension_numbers = #tpu.dot_dimension_numbers<[1], [0], [0], [1], [0, 0, 1, 1], [], []>} : vector<2x32xf32>, vector<32x16xf32>, vector<2x16xf32> -> vector<2x16xf32>
    %cst_52 = arith.constant 0.000000e+00 : f32
    %95 = vector.broadcast %cst_52 : f32 to vector<2x16xf32>
    %96 = arith.maximumf %94, %95 : vector<2x16xf32>
    %97 = arith.mulf %96, %96 : vector<2x16xf32>
    %cst_53 = arith.constant dense<0.000000e+00> : vector<2xf32>
    %98 = vector.multi_reduction <add>, %97, %cst_53 [1] : vector<2x16xf32> to vector<2xf32>
    %99 = vector.shape_cast %98 : vector<2xf32> to vector<2x1xf32>
    %100 = math.sqrt %99 : vector<2x1xf32>
    %cst_54 = arith.constant 9.99999996E-13 : f32
    %101 = vector.broadcast %cst_54 : f32 to vector<2x1xf32>
    %102 = arith.maximumf %100, %101 : vector<2x1xf32>
    %103 = tpu.reciprocal %102 {approx = true} : vector<2x1xf32> -> vector<2x1xf32>
    %104 = vector.broadcast %103 : vector<2x1xf32> to vector<2x16xf32>
    %105 = arith.mulf %96, %104 : vector<2x16xf32>
    %cst_55 = arith.constant dense<0.000000e+00> : vector<2x2xf32>
    %106 = tpu.matmul %105, %105, %cst_55 {dimension_numbers = #tpu.dot_dimension_numbers<[1], [1], [0], [0], [0, 0, 1, 0], [], []>} : vector<2x16xf32>, vector<2x16xf32>, vector<2x2xf32> -> vector<2x2xf32>
    %cst_56 = arith.constant 1.000000e+00 : f32
    %107 = vector.broadcast %cst_56 : f32 to vector<2x2xf32>
    %108 = arith.subf %106, %107 : vector<2x2xf32>
    %cst_57 = arith.constant 1.000000e+00 : f32
    %109 = vector.broadcast %cst_57 : f32 to vector<2x2xf32>
    %110 = arith.mulf %109, %108 : vector<2x2xf32>
    %111 = math.exp %110 : vector<2x2xf32>
    %112 = vector.shape_cast %111 : vector<2x2xf32> to vector<1x2x2xf32>
    %cst_58 = arith.constant dense<0.000000e+00> : vector<1xf32>
    %113 = vector.multi_reduction <add>, %112, %cst_58 [1, 2] : vector<1x2x2xf32> to vector<1xf32>
    %114 = vector.shape_cast %113 : vector<1xf32> to vector<1x1x1xf32>
    %115 = vector.extract %114[0, 0, 0] : f32 from vector<1x1x1xf32>
    %cst_59 = arith.constant 4.000000e+00 : f32
    %116 = arith.divf %115, %cst_59 : f32
    %117 = math.log %116 : f32
    %118 = vector.broadcast %117 : f32 to vector<1x1xf32>
    %c0_60 = arith.constant 0 : index
    %c0_61 = arith.constant 0 : index
    %119 = vector.load %arg10[%c0_60, %c0_61] : memref<1x1xf32, #tpu.memory_space<vmem>>, vector<1x1xf32>
    tpu.vector_store %arg10[%c0_60, %c0_61], %118 {strides = array<i32>} : memref<1x1xf32, #tpu.memory_space<vmem>>, vector<1x1xf32>,
    return
  }
  func.func @transform_0(%arg0: i32) -> (i32, i32) {
    %c0_i32 = arith.constant 0 : i32
    %c0_i32_0 = arith.constant 0 : i32
    %c0_i32_1 = arith.constant 0 : i32
    return %c0_i32, %c0_i32_0 : i32, i32
  }
  func.func @transform_1(%arg0: i32) -> (i32, i32) {
    %c0_i32 = arith.constant 0 : i32
    %c0_i32_0 = arith.constant 0 : i32
    %c0_i32_1 = arith.constant 0 : i32
    return %c0_i32, %c0_i32_0 : i32, i32
  }
  func.func @transform_2(%arg0: i32) -> (i32, i32, i32) {
    %c0_i32 = arith.constant 0 : i32
    %c0_i32_0 = arith.constant 0 : i32
    %c0_i32_1 = arith.constant 0 : i32
    %c0_i32_2 = arith.constant 0 : i32
    return %c0_i32, %c0_i32_0, %c0_i32_1 : i32, i32, i32
  }
  func.func @transform_3(%arg0: i32) -> (i32, i32, i32) {
    %c0_i32 = arith.constant 0 : i32
    %c0_i32_0 = arith.constant 0 : i32
    %c0_i32_1 = arith.constant 0 : i32
    %c0_i32_2 = arith.constant 0 : i32
    return %c0_i32, %c0_i32_0, %c0_i32_1 : i32, i32, i32
  }
  func.func @transform_4(%arg0: i32) -> (i32, i32, i32) {
    %c0_i32 = arith.constant 0 : i32
    %c0_i32_0 = arith.constant 0 : i32
    %c0_i32_1 = arith.constant 0 : i32
    %c0_i32_2 = arith.constant 0 : i32
    return %c0_i32, %c0_i32_0, %c0_i32_1 : i32, i32, i32
  }
  func.func @transform_5(%arg0: i32) -> (i32, i32, i32) {
    %c0_i32 = arith.constant 0 : i32
    %c0_i32_0 = arith.constant 0 : i32
    %c0_i32_1 = arith.constant 0 : i32
    %c0_i32_2 = arith.constant 0 : i32
    return %c0_i32, %c0_i32_0, %c0_i32_1 : i32, i32, i32
  }
  func.func @transform_6(%arg0: i32) -> (i32, i32) {
    %c0_i32 = arith.constant 0 : i32
    %c0_i32_0 = arith.constant 0 : i32
    %c0_i32_1 = arith.constant 0 : i32
    return %c0_i32, %c0_i32_0 : i32, i32
  }
  func.func @transform_7(%arg0: i32) -> (i32, i32) {
    %c0_i32 = arith.constant 0 : i32
    %c0_i32_0 = arith.constant 0 : i32
    %c0_i32_1 = arith.constant 0 : i32
    return %c0_i32, %c0_i32_0 : i32, i32
  }
  func.func @transform_8(%arg0: i32) -> (i32, i32) {
    %c0_i32 = arith.constant 0 : i32
    %c0_i32_0 = arith.constant 0 : i32
    %c0_i32_1 = arith.constant 0 : i32
    return %c0_i32, %c0_i32_0 : i32, i32
  }
  func.func @transform_9(%arg0: i32) -> (i32, i32) {
    %c0_i32 = arith.constant 0 : i32
    %c0_i32_0 = arith.constant 0 : i32
    %c0_i32_1 = arith.constant 0 : i32
    return %c0_i32, %c0_i32_0 : i32, i32
  }
}

</mosaic_0001>

<llo_original>
// kernel: tpu_custom_call.1
$region0: #{tpu_custom_call.1}
  #allocation0 [shape = 'u32[]', space=smem, size = 0x4, offset = 0x4, fixed_abs, tag = 'smem constant byte address 0x4 - core index']
  #allocation1 [shape = 'u32[144,128]{1,0:T(1,128)}', space=vmem, size = 0x12000, scoped, tag = 'internal scratch']
  %s0 = inlined_call_operand.vmem [shape: f32[16,32], index: 0, kind: input, shape index: {}]
  %s1 = inlined_call_operand.vmem [shape: f32[16,16], index: 1, kind: input, shape index: {}]
  %s2 = inlined_call_operand.vmem [shape: f32[2,16,32], index: 2, kind: input, shape index: {}]
  %s3 = inlined_call_operand.vmem [shape: f32[2,32,64], index: 3, kind: input, shape index: {}]
  %s4 = inlined_call_operand.vmem [shape: f32[2,64,32], index: 4, kind: input, shape index: {}]
  %s5 = inlined_call_operand.vmem [shape: f32[2,4,64], index: 5, kind: input, shape index: {}]
  %s6 = inlined_call_operand.vmem [shape: f32[2,16], index: 6, kind: input, shape index: {}]
  %s7 = inlined_call_operand.vmem [shape: f32[32,16], index: 7, kind: input, shape index: {}]
  %s8 = inlined_call_operand.hbm [shape: f32[16,32], index: 8, kind: output, shape index: {0}]
  %s9 = inlined_call_operand.hbm [shape: f32[1,1], index: 9, kind: output, shape index: {1}]
  %10 = xla_tuple %s8, %s9
  %s11 = sld [smem:[#allocation0]]
  $region50: #{tpu_custom_call.1} parent=0
    _
  %s13 = ssub.s32 1, %s11
  %s14 = scalar_select 0, %s13, %s11
  $region1: #{tpu_custom_call.1} parent=0
    #allocation2 [shape = 'u8[8192]{0}', space=vmem, size = 0x2000, scoped, tag = 'output window, operand 0, single buffered']
    #allocation3 [shape = 's32[1]{0}', space=sflag, size = 0x4, scoped, tag = 'scoped memory for tpu_custom_call.1']
    #allocation4 [shape = 'u8[512]{0}', space=vmem, size = 0x400, scoped, tag = 'output window, operand 1, single buffered']
    #allocation5 [shape = 's32[1]{0}', space=sflag, size = 0x4, scoped, tag = 'scoped memory for tpu_custom_call.1']
    %15 = vsyncpa [#allocation3], 0
    %16 = vsyncpa [#allocation5], 0
    // Predicated region
    $region2: #{tpu_custom_call.1} parent=1 // pred_check
      _
    $region3: #{tpu_custom_call.1} parent=1 // pred_check_branch
      %18 = sbr.rel (0) target = $region5
    $region4: #{tpu_custom_call.1} parent=1 // pred_region
      _
    $region5: #{tpu_custom_call.1} parent=1 // pred_fallthru
      _
    // Predicated region
    $region6: #{tpu_custom_call.1} parent=1 // pred_check
      _
    $region7: #{tpu_custom_call.1} parent=1 // pred_check_branch
      %20 = sbr.rel (0) target = $region9
    $region8: #{tpu_custom_call.1} parent=1 // pred_region
      _
    $region9: #{tpu_custom_call.1} parent=1 // pred_fallthru
      _
    // Predicated region
    $region10: #{tpu_custom_call.1} parent=1 // pred_check
      _
    $region11: #{tpu_custom_call.1} parent=1 // pred_check_branch
      %22 = sbr.rel (0) target = $region13
    $region12: #{tpu_custom_call.1} parent=1 // pred_region
      _
    $region13: #{tpu_custom_call.1} parent=1 // pred_fallthru
      _
    // Predicated region
    $region14: #{tpu_custom_call.1} parent=1 // pred_check
      _
    $region15: #{tpu_custom_call.1} parent=1 // pred_check_branch
      %24 = sbr.rel (0) target = $region17
    $region16: #{tpu_custom_call.1} parent=1 // pred_region
      _
    $region17: #{tpu_custom_call.1} parent=1 // pred_fallthru
      _
    // Predicated region
    $region18: #{tpu_custom_call.1} parent=1 // pred_check
      _
    $region19: #{tpu_custom_call.1} parent=1 // pred_check_branch
      %26 = sbr.rel (0) target = $region21
    $region20: #{tpu_custom_call.1} parent=1 // pred_region
      _
    $region21: #{tpu_custom_call.1} parent=1 // pred_fallthru
      _
    // Predicated region
    $region22: #{tpu_custom_call.1} parent=1 // pred_check
      _
    $region23: #{tpu_custom_call.1} parent=1 // pred_check_branch
      %28 = sbr.rel (0) target = $region25
    $region24: #{tpu_custom_call.1} parent=1 // pred_region
      _
    $region25: #{tpu_custom_call.1} parent=1 // pred_fallthru
      _
    // Predicated region
    $region26: #{tpu_custom_call.1} parent=1 // pred_check
      _
    $region27: #{tpu_custom_call.1} parent=1 // pred_check_branch
      %30 = sbr.rel (0) target = $region29
    $region28: #{tpu_custom_call.1} parent=1 // pred_region
      _
    $region29: #{tpu_custom_call.1} parent=1 // pred_fallthru
      _
    // Predicated region
    $region30: #{tpu_custom_call.1} parent=1 // pred_check
      _
    $region31: #{tpu_custom_call.1} parent=1 // pred_check_branch
      %32 = sbr.rel (0) target = $region33
    $region32: #{tpu_custom_call.1} parent=1 // pred_region
      _
    $region33: #{tpu_custom_call.1} parent=1 // pred_fallthru
      _
    %v33 = vld [vmem:[%s0] sm:$0xff]
    %v34 = vld [vmem:[%s0 + $0x8] sm:$0xff]
    %v35 = vld [vmem:[%s1] sm:$0xff]
    %v36 = vld [vmem:[%s1 + $0x8] sm:$0xff]
    %v37 = vld [vmem:[%s3] sm:$0xff]
    %v38 = vld [vmem:[%s3 + $0x8] sm:$0xff]
    %v39 = vld [vmem:[%s3 + $0x10] sm:$0xff]
    %v40 = vld [vmem:[%s3 + $0x18] sm:$0xff]
    %v41 = vld [vmem:[%s4] sm:$0xff]
    %v42 = vld [vmem:[%s4 + $0x8] sm:$0xff]
    %v43 = vld [vmem:[%s4 + $0x10] sm:$0xff]
    %v44 = vld [vmem:[%s4 + $0x18] sm:$0xff]
    %v45 = vld [vmem:[%s4 + $0x20] sm:$0xff]
    %v46 = vld [vmem:[%s4 + $0x28] sm:$0xff]
    %v47 = vld [vmem:[%s4 + $0x30] sm:$0xff]
    %v48 = vld [vmem:[%s4 + $0x38] sm:$0xff]
    %v49 = vld [vmem:[%s5] sm:$0xf]
    %v50 = vld [vmem:[%s2] sm:$0xff]
    %v51 = vld [vmem:[%s2 + $0x8] sm:$0xff]
    %vm52 = vcmask 130048
    %v54 = vsel %vm52, %v35, 0
    %v57 = vsel %vm52, %v36, 0
    %59 = vmatprep.subr.mxu0 0.0
    %60 = vmatpush1.msra.mxu0 0.0
    %61 = vmatprep.subr.mxu0 0.0
    %62 = vmatpush1.msra.mxu0 0.0
    %63 = vmatprep.subr.mxu0 0.0
    %64 = vmatpush1.msra.mxu0 0.0
    %65 = vmatprep.subr.mxu0 0.0
    %66 = vmatpush1.msra.mxu0 0.0
    %67 = vmatprep.subr.mxu0 0.0
    %68 = vmatpush1.msra.mxu0 0.0
    %69 = vmatprep.subr.mxu0 0.0
    %70 = vmatpush1.msra.mxu0 0.0
    %71 = vmatprep.subr.mxu0 0.0
    %72 = vmatpush1.msra.mxu0 0.0
    %73 = vmatprep.subr.mxu0 0.0
    %74 = vmatpush1.msra.mxu0 0.0
    %75 = vmatprep.subr.mxu0 0.0
    %76 = vmatpush1.msra.mxu0 0.0
    %77 = vmatprep.subr.mxu0 0.0
    %78 = vmatpush1.msra.mxu0 0.0
    %79 = vmatprep.subr.mxu0 0.0
    %80 = vmatpush1.msra.mxu0 0.0
    %81 = vmatprep.subr.mxu0 0.0
    %82 = vmatpush1.msra.mxu0 0.0
    %83 = vmatprep.subr.mxu0 0.0
    %84 = vmatpush1.msra.mxu0 0.0
    %85 = vmatprep.subr.mxu0 0.0
    %86 = vmatpush1.msra.mxu0 0.0
    %87 = vmatprep.subr.mxu0 0.0
    %88 = vmatpush1.msra.mxu0 %v34
    %89 = vmatprep.subr.mxu0 0.0
    %90 = vmatpush1.msra.mxu0 %v33
    %91 = vmatprep.subr.mxu0 0.0
    %92 = vmatpush2.msra.mxu0 0.0
    %93 = vmatprep.subr.mxu0 0.0
    %94 = vmatpush2.msra.mxu0 0.0
    %95 = vmatprep.subr.mxu0 0.0
    %96 = vmatpush2.msra.mxu0 0.0
    %97 = vmatprep.subr.mxu0 0.0
    %98 = vmatpush2.msra.mxu0 0.0
    %99 = vmatprep.subr.mxu0 0.0
    %100 = vmatpush2.msra.mxu0 0.0
    %101 = vmatprep.subr.mxu0 0.0
    %102 = vmatpush2.msra.mxu0 0.0
    %103 = vmatprep.subr.mxu0 0.0
    %104 = vmatpush2.msra.mxu0 0.0
    %105 = vmatprep.subr.mxu0 0.0
    %106 = vmatpush2.msra.mxu0 0.0
    %107 = vmatprep.subr.mxu0 0.0
    %108 = vmatpush2.msra.mxu0 0.0
    %109 = vmatprep.subr.mxu0 0.0
    %110 = vmatpush2.msra.mxu0 0.0
    %111 = vmatprep.subr.mxu0 0.0
    %112 = vmatpush2.msra.mxu0 0.0
    %113 = vmatprep.subr.mxu0 0.0
    %114 = vmatpush2.msra.mxu0 0.0
    %115 = vmatprep.subr.mxu0 0.0
    %116 = vmatpush2.msra.mxu0 0.0
    %117 = vmatprep.subr.mxu0 0.0
    %118 = vmatpush2.msra.mxu0 0.0
    %119 = vmatprep.subr.mxu0 0.0
    %120 = vmatpush2.msra.mxu0 0.0
    %121 = vmatprep.subr.mxu0 0.0
    %122 = vmatpush2.msra.mxu0 0.0
    %123 = vmatprep.mubr.f32.mxu0 0.0
    %124 = vmatmul.mubr.f32.gmra.mxu0 %v54
    %v125 = vpop.f32.mrf.mxu0
    %v126 = vadd.f32 %v50, %v125
    %v127 = vpop.f32.mrf.mxu0
    %128 = vmatprep.mubr.f32.mxu0 0.0
    %129 = vmatmul.mubr.f32.gmra.mxu0 %v57
    %v130 = vpop.f32.mrf.mxu0
    %v131 = vadd.f32 %v51, %v130
    %v132 = vpop.f32.mrf.mxu0
    %133 = vdwg.mxu0
    %v134 = vlaneseq
    %v135 = vshrl.u32 %v134, 7
    %v136 = vsub.s32 0, %v135
    %v137 = vrot.slane %v49, %v136
    %vm138 = vcmask 261120
    %v140 = vsel %vm138, %v126, 0
    %v143 = vsel %vm138, %v131, 0
    %145 = vmatprep.subr.mxu0 0.0
    %146 = vmatpush1.msra.mxu0 0.0
    %147 = vmatprep.subr.mxu0 0.0
    %148 = vmatpush1.msra.mxu0 0.0
    %149 = vmatprep.subr.mxu0 0.0
    %150 = vmatpush1.msra.mxu0 0.0
    %151 = vmatprep.subr.mxu0 0.0
    %152 = vmatpush1.msra.mxu0 0.0
    %153 = vmatprep.subr.mxu0 0.0
    %154 = vmatpush1.msra.mxu0 0.0
    %155 = vmatprep.subr.mxu0 0.0
    %156 = vmatpush1.msra.mxu0 0.0
    %157 = vmatprep.subr.mxu0 0.0
    %158 = vmatpush1.msra.mxu0 0.0
    %159 = vmatprep.subr.mxu0 0.0
    %160 = vmatpush1.msra.mxu0 0.0
    %161 = vmatprep.subr.mxu0 0.0
    %162 = vmatpush1.msra.mxu0 0.0
    %163 = vmatprep.subr.mxu0 0.0
    %164 = vmatpush1.msra.mxu0 0.0
    %165 = vmatprep.subr.mxu0 0.0
    %166 = vmatpush1.msra.mxu0 0.0
    %167 = vmatprep.subr.mxu0 0.0
    %168 = vmatpush1.msra.mxu0 0.0
    %169 = vmatprep.subr.mxu0 0.0
    %170 = vmatpush1.msra.mxu0 %v40
    %171 = vmatprep.subr.mxu0 0.0
    %172 = vmatpush1.msra.mxu0 %v39
    %173 = vmatprep.subr.mxu0 0.0
    %174 = vmatpush1.msra.mxu0 %v38
    %175 = vmatprep.subr.mxu0 0.0
    %176 = vmatpush1.msra.mxu0 %v37
    %177 = vmatprep.subr.mxu0 0.0
    %178 = vmatpush2.msra.mxu0 0.0
    %179 = vmatprep.subr.mxu0 0.0
    %180 = vmatpush2.msra.mxu0 0.0
    %181 = vmatprep.subr.mxu0 0.0
    %182 = vmatpush2.msra.mxu0 0.0
    %183 = vmatprep.subr.mxu0 0.0
    %184 = vmatpush2.msra.mxu0 0.0
    %185 = vmatprep.subr.mxu0 0.0
    %186 = vmatpush2.msra.mxu0 0.0
    %187 = vmatprep.subr.mxu0 0.0
    %188 = vmatpush2.msra.mxu0 0.0
    %189 = vmatprep.subr.mxu0 0.0
    %190 = vmatpush2.msra.mxu0 0.0
    %191 = vmatprep.subr.mxu0 0.0
    %192 = vmatpush2.msra.mxu0 0.0
    %193 = vmatprep.subr.mxu0 0.0
    %194 = vmatpush2.msra.mxu0 0.0
    %195 = vmatprep.subr.mxu0 0.0
    %196 = vmatpush2.msra.mxu0 0.0
    %197 = vmatprep.subr.mxu0 0.0
    %198 = vmatpush2.msra.mxu0 0.0
    %199 = vmatprep.subr.mxu0 0.0
    %200 = vmatpush2.msra.mxu0 0.0
    %201 = vmatprep.subr.mxu0 0.0
    %202 = vmatpush2.msra.mxu0 0.0
    %203 = vmatprep.subr.mxu0 0.0
    %204 = vmatpush2.msra.mxu0 0.0
    %205 = vmatprep.subr.mxu0 0.0
    %206 = vmatpush2.msra.mxu0 0.0
    %207 = vmatprep.subr.mxu0 0.0
    %208 = vmatpush2.msra.mxu0 0.0
    %209 = vmatprep.mubr.f32.mxu0 0.0
    %210 = vmatmul.mubr.f32.gmra.mxu0 %v140
    %v211 = vpop.f32.mrf.mxu0
    %v212 = vadd.f32 %v137, %v211
    %v213 = vpop.f32.mrf.mxu0
    %214 = vmatprep.mubr.f32.mxu0 0.0
    %215 = vmatmul.mubr.f32.gmra.mxu0 %v143
    %v216 = vpop.f32.mrf.mxu0
    %v217 = vadd.f32 %v137, %v216
    %v218 = vpop.f32.mrf.mxu0
    %219 = vdwg.mxu0
    %v220 = vmax.f32 %v212, 0.0
    %v221 = vmax.f32 %v217, 0.0
    %v222 = vlaneseq
    %v223 = vshrl.u32 %v222, 7
    %v224 = vsub.s32 1, %v223
    %v225 = vrot.slane %v49, %v224
    %vm226 = vcmask 523264
    %v228 = vsel %vm226, %v220, 0
    %v231 = vsel %vm226, %v221, 0
    %233 = vmatprep.subr.mxu0 0.0
    %234 = vmatpush1.msra.mxu0 0.0
    %235 = vmatprep.subr.mxu0 0.0
    %236 = vmatpush1.msra.mxu0 0.0
    %237 = vmatprep.subr.mxu0 0.0
    %238 = vmatpush1.msra.mxu0 0.0
    %239 = vmatprep.subr.mxu0 0.0
    %240 = vmatpush1.msra.mxu0 0.0
    %241 = vmatprep.subr.mxu0 0.0
    %242 = vmatpush1.msra.mxu0 0.0
    %243 = vmatprep.subr.mxu0 0.0
    %244 = vmatpush1.msra.mxu0 0.0
    %245 = vmatprep.subr.mxu0 0.0
    %246 = vmatpush1.msra.mxu0 0.0
    %247 = vmatprep.subr.mxu0 0.0
    %248 = vmatpush1.msra.mxu0 0.0
    %249 = vmatprep.subr.mxu0 0.0
    %250 = vmatpush1.msra.mxu0 %v48
    %251 = vmatprep.subr.mxu0 0.0
    %252 = vmatpush1.msra.mxu0 %v47
    %253 = vmatprep.subr.mxu0 0.0
    %254 = vmatpush1.msra.mxu0 %v46
    %255 = vmatprep.subr.mxu0 0.0
    %256 = vmatpush1.msra.mxu0 %v45
    %257 = vmatprep.subr.mxu0 0.0
    %258 = vmatpush1.msra.mxu0 %v44
    %259 = vmatprep.subr.mxu0 0.0
    %260 = vmatpush1.msra.mxu0 %v43
    %261 = vmatprep.subr.mxu0 0.0
    %262 = vmatpush1.msra.mxu0 %v42
    %263 = vmatprep.subr.mxu0 0.0
    %264 = vmatpush1.msra.mxu0 %v41
    %265 = vmatprep.subr.mxu0 0.0
    %266 = vmatpush2.msra.mxu0 0.0
    %267 = vmatprep.subr.mxu0 0.0
    %268 = vmatpush2.msra.mxu0 0.0
    %269 = vmatprep.subr.mxu0 0.0
    %270 = vmatpush2.msra.mxu0 0.0
    %271 = vmatprep.subr.mxu0 0.0
    %272 = vmatpush2.msra.mxu0 0.0
    %273 = vmatprep.subr.mxu0 0.0
    %274 = vmatpush2.msra.mxu0 0.0
    %275 = vmatprep.subr.mxu0 0.0
    %276 = vmatpush2.msra.mxu0 0.0
    %277 = vmatprep.subr.mxu0 0.0
    %278 = vmatpush2.msra.mxu0 0.0
    %279 = vmatprep.subr.mxu0 0.0
    %280 = vmatpush2.msra.mxu0 0.0
    %281 = vmatprep.subr.mxu0 0.0
    %282 = vmatpush2.msra.mxu0 0.0
    %283 = vmatprep.subr.mxu0 0.0
    %284 = vmatpush2.msra.mxu0 0.0
    %285 = vmatprep.subr.mxu0 0.0
    %286 = vmatpush2.msra.mxu0 0.0
    %287 = vmatprep.subr.mxu0 0.0
    %288 = vmatpush2.msra.mxu0 0.0
    %289 = vmatprep.subr.mxu0 0.0
    %290 = vmatpush2.msra.mxu0 0.0
    %291 = vmatprep.subr.mxu0 0.0
    %292 = vmatpush2.msra.mxu0 0.0
    %293 = vmatprep.subr.mxu0 0.0
    %294 = vmatpush2.msra.mxu0 0.0
    %295 = vmatprep.subr.mxu0 0.0
    %296 = vmatpush2.msra.mxu0 0.0
    %297 = vmatprep.mubr.f32.mxu0 0.0
    %298 = vmatmul.mubr.f32.gmra.mxu0 %v228
    %v299 = vpop.f32.mrf.mxu0
    %v300 = vadd.f32 %v225, %v299
    %v301 = vpop.f32.mrf.mxu0
    %302 = vmatprep.mubr.f32.mxu0 0.0
    %303 = vmatmul.mubr.f32.gmra.mxu0 %v231
    %v304 = vpop.f32.mrf.mxu0
    %v305 = vadd.f32 %v225, %v304
    %v306 = vpop.f32.mrf.mxu0
    %307 = vdwg.mxu0
    %v308 = vsel %vm138, %v300, 0.0
    %v309 = vsel %vm138, %v305, 0.0
    %v310 = vadd.f32 %v308, %v309
    %v311 = vrot.slane %v310, 4
    %v312 = vadd.f32 %v310, %v311
    %v313 = vrot.slane %v312, 2
    %v314 = vadd.f32 %v312, %v313
    %v315 = vrot.slane %v314, 1
    %v316 = vadd.f32 %v314, %v315
    %v317 = vrcp.pop 16.0
    %v318 = vmul.f32 %v316, %v317
    %v319 = vsub.f32 %v300, %v318
    %v320 = vsub.f32 %v305, %v318
    %v321 = vmul.f32 %v319, %v319
    %v322 = vmul.f32 %v320, %v320
    %v323 = vsel %vm138, %v321, 0.0
    %v324 = vsel %vm138, %v322, 0.0
    %v325 = vadd.f32 %v323, %v324
    %v326 = vrot.slane %v325, 4
    %v327 = vadd.f32 %v325, %v326
    %v328 = vrot.slane %v327, 2
    %v329 = vadd.f32 %v327, %v328
    %v330 = vrot.slane %v329, 1
    %v331 = vadd.f32 %v329, %v330
    %v332 = vmul.f32 %v331, %v317
    %v333 = vadd.f32 %v332, 1e-05
    %v334 = vrsqrt.pop %v333
    %v335 = vmul.f32 %v49, %v334
    %v336 = vlaneseq
    %v337 = vshrl.u32 %v336, 7
    %v338 = vsub.s32 2, %v337
    %v339 = vrot.slane %v335, %v338
    %v340 = vmul.f32 %v319, %v339
    %v341 = vmul.f32 %v320, %v339
    %v342 = vlaneseq
    %v343 = vshrl.u32 %v342, 7
    %v344 = vsub.s32 3, %v343
    %v345 = vrot.slane %v49, %v344
    %v346 = vadd.f32 %v340, %v345
    %v347 = vadd.f32 %v341, %v345
    %v348 = vmax.f32 %v346, 0.0
    %v349 = vmax.f32 %v347, 0.0
    %s350 = scalar_lea.vmem %s3, 32
    %v351 = vld [vmem:[%s350] sm:$0xff]
    %v352 = vld [vmem:[%s350 + $0x8] sm:$0xff]
    %v353 = vld [vmem:[%s350 + $0x10] sm:$0xff]
    %v354 = vld [vmem:[%s350 + $0x18] sm:$0xff]
    %s355 = scalar_lea.vmem %s4, 64
    %v356 = vld [vmem:[%s355] sm:$0xff]
    %v357 = vld [vmem:[%s355 + $0x8] sm:$0xff]
    %v358 = vld [vmem:[%s355 + $0x10] sm:$0xff]
    %v359 = vld [vmem:[%s355 + $0x18] sm:$0xff]
    %v360 = vld [vmem:[%s355 + $0x20] sm:$0xff]
    %v361 = vld [vmem:[%s355 + $0x28] sm:$0xff]
    %v362 = vld [vmem:[%s355 + $0x30] sm:$0xff]
    %v363 = vld [vmem:[%s355 + $0x38] sm:$0xff]
    %s364 = scalar_lea.vmem %s5, 4
    %v365 = vld [vmem:[%s364] sm:$0xf]
    %s366 = scalar_lea.vmem %s2, 16
    %v367 = vld [vmem:[%s366] sm:$0xff]
    %v368 = vld [vmem:[%s366 + $0x8] sm:$0xff]
    %369 = vmatprep.subr.mxu0 0.0
    %370 = vmatpush1.msra.mxu0 0.0
    %371 = vmatprep.subr.mxu0 0.0
    %372 = vmatpush1.msra.mxu0 0.0
    %373 = vmatprep.subr.mxu0 0.0
    %374 = vmatpush1.msra.mxu0 0.0
    %375 = vmatprep.subr.mxu0 0.0
    %376 = vmatpush1.msra.mxu0 0.0
    %377 = vmatprep.subr.mxu0 0.0
    %378 = vmatpush1.msra.mxu0 0.0
    %379 = vmatprep.subr.mxu0 0.0
    %380 = vmatpush1.msra.mxu0 0.0
    %381 = vmatprep.subr.mxu0 0.0
    %382 = vmatpush1.msra.mxu0 0.0
    %383 = vmatprep.subr.mxu0 0.0
    %384 = vmatpush1.msra.mxu0 0.0
    %385 = vmatprep.subr.mxu0 0.0
    %386 = vmatpush1.msra.mxu0 0.0
    %387 = vmatprep.subr.mxu0 0.0
    %388 = vmatpush1.msra.mxu0 0.0
    %389 = vmatprep.subr.mxu0 0.0
    %390 = vmatpush1.msra.mxu0 0.0
    %391 = vmatprep.subr.mxu0 0.0
    %392 = vmatpush1.msra.mxu0 0.0
    %393 = vmatprep.subr.mxu0 0.0
    %394 = vmatpush1.msra.mxu0 0.0
    %395 = vmatprep.subr.mxu0 0.0
    %396 = vmatpush1.msra.mxu0 0.0
    %397 = vmatprep.subr.mxu0 0.0
    %398 = vmatpush1.msra.mxu0 %v349
    %399 = vmatprep.subr.mxu0 0.0
    %400 = vmatpush1.msra.mxu0 %v348
    %401 = vmatprep.subr.mxu0 0.0
    %402 = vmatpush2.msra.mxu0 0.0
    %403 = vmatprep.subr.mxu0 0.0
    %404 = vmatpush2.msra.mxu0 0.0
    %405 = vmatprep.subr.mxu0 0.0
    %406 = vmatpush2.msra.mxu0 0.0
    %407 = vmatprep.subr.mxu0 0.0
    %408 = vmatpush2.msra.mxu0 0.0
    %409 = vmatprep.subr.mxu0 0.0
    %410 = vmatpush2.msra.mxu0 0.0
    %411 = vmatprep.subr.mxu0 0.0
    %412 = vmatpush2.msra.mxu0 0.0
    %413 = vmatprep.subr.mxu0 0.0
    %414 = vmatpush2.msra.mxu0 0.0
    %415 = vmatprep.subr.mxu0 0.0
    %416 = vmatpush2.msra.mxu0 0.0
    %417 = vmatprep.subr.mxu0 0.0
    %418 = vmatpush2.msra.mxu0 0.0
    %419 = vmatprep.subr.mxu0 0.0
    %420 = vmatpush2.msra.mxu0 0.0
    %421 = vmatprep.subr.mxu0 0.0
    %422 = vmatpush2.msra.mxu0 0.0
    %423 = vmatprep.subr.mxu0 0.0
    %424 = vmatpush2.msra.mxu0 0.0
    %425 = vmatprep.subr.mxu0 0.0
    %426 = vmatpush2.msra.mxu0 0.0
    %427 = vmatprep.subr.mxu0 0.0
    %428 = vmatpush2.msra.mxu0 0.0
    %429 = vmatprep.subr.mxu0 0.0
    %430 = vmatpush2.msra.mxu0 0.0
    %431 = vmatprep.subr.mxu0 0.0
    %432 = vmatpush2.msra.mxu0 0.0
    %433 = vmatprep.mubr.f32.mxu0 0.0
    %434 = vmatmul.mubr.f32.gmra.mxu0 %v54
    %v435 = vpop.f32.mrf.mxu0
    %v436 = vadd.f32 %v367, %v435
    %v437 = vpop.f32.mrf.mxu0
    %438 = vmatprep.mubr.f32.mxu0 0.0
    %439 = vmatmul.mubr.f32.gmra.mxu0 %v57
    %v440 = vpop.f32.mrf.mxu0
    %v441 = vadd.f32 %v368, %v440
    %v442 = vpop.f32.mrf.mxu0
    %443 = vdwg.mxu0
    %v444 = vlaneseq
    %v445 = vshrl.u32 %v444, 7
    %v446 = vsub.s32 0, %v445
    %v447 = vrot.slane %v365, %v446
    %v449 = vsel %vm138, %v436, 0
    %v452 = vsel %vm138, %v441, 0
    %454 = vmatprep.subr.mxu0 0.0
    %455 = vmatpush1.msra.mxu0 0.0
    %456 = vmatprep.subr.mxu0 0.0
    %457 = vmatpush1.msra.mxu0 0.0
    %458 = vmatprep.subr.mxu0 0.0
    %459 = vmatpush1.msra.mxu0 0.0
    %460 = vmatprep.subr.mxu0 0.0
    %461 = vmatpush1.msra.mxu0 0.0
    %462 = vmatprep.subr.mxu0 0.0
    %463 = vmatpush1.msra.mxu0 0.0
    %464 = vmatprep.subr.mxu0 0.0
    %465 = vmatpush1.msra.mxu0 0.0
    %466 = vmatprep.subr.mxu0 0.0
    %467 = vmatpush1.msra.mxu0 0.0
    %468 = vmatprep.subr.mxu0 0.0
    %469 = vmatpush1.msra.mxu0 0.0
    %470 = vmatprep.subr.mxu0 0.0
    %471 = vmatpush1.msra.mxu0 0.0
    %472 = vmatprep.subr.mxu0 0.0
    %473 = vmatpush1.msra.mxu0 0.0
    %474 = vmatprep.subr.mxu0 0.0
    %475 = vmatpush1.msra.mxu0 0.0
    %476 = vmatprep.subr.mxu0 0.0
    %477 = vmatpush1.msra.mxu0 0.0
    %478 = vmatprep.subr.mxu0 0.0
    %479 = vmatpush1.msra.mxu0 %v354
    %480 = vmatprep.subr.mxu0 0.0
    %481 = vmatpush1.msra.mxu0 %v353
    %482 = vmatprep.subr.mxu0 0.0
    %483 = vmatpush1.msra.mxu0 %v352
    %484 = vmatprep.subr.mxu0 0.0
    %485 = vmatpush1.msra.mxu0 %v351
    %486 = vmatprep.subr.mxu0 0.0
    %487 = vmatpush2.msra.mxu0 0.0
    %488 = vmatprep.subr.mxu0 0.0
    %489 = vmatpush2.msra.mxu0 0.0
    %490 = vmatprep.subr.mxu0 0.0
    %491 = vmatpush2.msra.mxu0 0.0
    %492 = vmatprep.subr.mxu0 0.0
    %493 = vmatpush2.msra.mxu0 0.0
    %494 = vmatprep.subr.mxu0 0.0
    %495 = vmatpush2.msra.mxu0 0.0
    %496 = vmatprep.subr.mxu0 0.0
    %497 = vmatpush2.msra.mxu0 0.0
    %498 = vmatprep.subr.mxu0 0.0
    %499 = vmatpush2.msra.mxu0 0.0
    %500 = vmatprep.subr.mxu0 0.0
    %501 = vmatpush2.msra.mxu0 0.0
    %502 = vmatprep.subr.mxu0 0.0
    %503 = vmatpush2.msra.mxu0 0.0
    %504 = vmatprep.subr.mxu0 0.0
    %505 = vmatpush2.msra.mxu0 0.0
    %506 = vmatprep.subr.mxu0 0.0
    %507 = vmatpush2.msra.mxu0 0.0
    %508 = vmatprep.subr.mxu0 0.0
    %509 = vmatpush2.msra.mxu0 0.0
    %510 = vmatprep.subr.mxu0 0.0
    %511 = vmatpush2.msra.mxu0 0.0
    %512 = vmatprep.subr.mxu0 0.0
    %513 = vmatpush2.msra.mxu0 0.0
    %514 = vmatprep.subr.mxu0 0.0
    %515 = vmatpush2.msra.mxu0 0.0
    %516 = vmatprep.subr.mxu0 0.0
    %517 = vmatpush2.msra.mxu0 0.0
    %518 = vmatprep.mubr.f32.mxu0 0.0
    %519 = vmatmul.mubr.f32.gmra.mxu0 %v449
    %v520 = vpop.f32.mrf.mxu0
    %v521 = vadd.f32 %v447, %v520
    %v522 = vpop.f32.mrf.mxu0
    %523 = vmatprep.mubr.f32.mxu0 0.0
    %524 = vmatmul.mubr.f32.gmra.mxu0 %v452
    %v525 = vpop.f32.mrf.mxu0
    %v526 = vadd.f32 %v447, %v525
    %v527 = vpop.f32.mrf.mxu0
    %528 = vdwg.mxu0
    %v529 = vmax.f32 %v521, 0.0
    %v530 = vmax.f32 %v526, 0.0
    %v531 = vlaneseq
    %v532 = vshrl.u32 %v531, 7
    %v533 = vsub.s32 1, %v532
    %v534 = vrot.slane %v365, %v533
    %v536 = vsel %vm226, %v529, 0
    %v539 = vsel %vm226, %v530, 0
    %541 = vmatprep.subr.mxu0 0.0
    %542 = vmatpush1.msra.mxu0 0.0
    %543 = vmatprep.subr.mxu0 0.0
    %544 = vmatpush1.msra.mxu0 0.0
    %545 = vmatprep.subr.mxu0 0.0
    %546 = vmatpush1.msra.mxu0 0.0
    %547 = vmatprep.subr.mxu0 0.0
    %548 = vmatpush1.msra.mxu0 0.0
    %549 = vmatprep.subr.mxu0 0.0
    %550 = vmatpush1.msra.mxu0 0.0
    %551 = vmatprep.subr.mxu0 0.0
    %552 = vmatpush1.msra.mxu0 0.0
    %553 = vmatprep.subr.mxu0 0.0
    %554 = vmatpush1.msra.mxu0 0.0
    %555 = vmatprep.subr.mxu0 0.0
    %556 = vmatpush1.msra.mxu0 0.0
    %557 = vmatprep.subr.mxu0 0.0
    %558 = vmatpush1.msra.mxu0 %v363
    %559 = vmatprep.subr.mxu0 0.0
    %560 = vmatpush1.msra.mxu0 %v362
    %561 = vmatprep.subr.mxu0 0.0
    %562 = vmatpush1.msra.mxu0 %v361
    %563 = vmatprep.subr.mxu0 0.0
    %564 = vmatpush1.msra.mxu0 %v360
    %565 = vmatprep.subr.mxu0 0.0
    %566 = vmatpush1.msra.mxu0 %v359
    %567 = vmatprep.subr.mxu0 0.0
    %568 = vmatpush1.msra.mxu0 %v358
    %569 = vmatprep.subr.mxu0 0.0
    %570 = vmatpush1.msra.mxu0 %v357
    %571 = vmatprep.subr.mxu0 0.0
    %572 = vmatpush1.msra.mxu0 %v356
    %573 = vmatprep.subr.mxu0 0.0
    %574 = vmatpush2.msra.mxu0 0.0
    %575 = vmatprep.subr.mxu0 0.0
    %576 = vmatpush2.msra.mxu0 0.0
    %577 = vmatprep.subr.mxu0 0.0
    %578 = vmatpush2.msra.mxu0 0.0
    %579 = vmatprep.subr.mxu0 0.0
    %580 = vmatpush2.msra.mxu0 0.0
    %581 = vmatprep.subr.mxu0 0.0
    %582 = vmatpush2.msra.mxu0 0.0
    %583 = vmatprep.subr.mxu0 0.0
    %584 = vmatpush2.msra.mxu0 0.0
    %585 = vmatprep.subr.mxu0 0.0
    %586 = vmatpush2.msra.mxu0 0.0
    %587 = vmatprep.subr.mxu0 0.0
    %588 = vmatpush2.msra.mxu0 0.0
    %589 = vmatprep.subr.mxu0 0.0
    %590 = vmatpush2.msra.mxu0 0.0
    %591 = vmatprep.subr.mxu0 0.0
    %592 = vmatpush2.msra.mxu0 0.0
    %593 = vmatprep.subr.mxu0 0.0
    %594 = vmatpush2.msra.mxu0 0.0
    %595 = vmatprep.subr.mxu0 0.0
    %596 = vmatpush2.msra.mxu0 0.0
    %597 = vmatprep.subr.mxu0 0.0
    %598 = vmatpush2.msra.mxu0 0.0
    %599 = vmatprep.subr.mxu0 0.0
    %600 = vmatpush2.msra.mxu0 0.0
    %601 = vmatprep.subr.mxu0 0.0
    %602 = vmatpush2.msra.mxu0 0.0
    %603 = vmatprep.subr.mxu0 0.0
    %604 = vmatpush2.msra.mxu0 0.0
    %605 = vmatprep.mubr.f32.mxu0 0.0
    %606 = vmatmul.mubr.f32.gmra.mxu0 %v536
    %v607 = vpop.f32.mrf.mxu0
    %v608 = vadd.f32 %v534, %v607
    %v609 = vpop.f32.mrf.mxu0
    %610 = vmatprep.mubr.f32.mxu0 0.0
    %611 = vmatmul.mubr.f32.gmra.mxu0 %v539
    %v612 = vpop.f32.mrf.mxu0
    %v613 = vadd.f32 %v534, %v612
    %v614 = vpop.f32.mrf.mxu0
    %615 = vdwg.mxu0
    %v616 = vsel %vm138, %v608, 0.0
    %v617 = vsel %vm138, %v613, 0.0
    %v618 = vadd.f32 %v616, %v617
    %v619 = vrot.slane %v618, 4
    %v620 = vadd.f32 %v618, %v619
    %v621 = vrot.slane %v620, 2
    %v622 = vadd.f32 %v620, %v621
    %v623 = vrot.slane %v622, 1
    %v624 = vadd.f32 %v622, %v623
    %v625 = vmul.f32 %v624, %v317
    %v626 = vsub.f32 %v608, %v625
    %v627 = vsub.f32 %v613, %v625
    %v628 = vmul.f32 %v626, %v626
    %v629 = vmul.f32 %v627, %v627
    %v630 = vsel %vm138, %v628, 0.0
    %v631 = vsel %vm138, %v629, 0.0
    %v632 = vadd.f32 %v630, %v631
    %v633 = vrot.slane %v632, 4
    %v634 = vadd.f32 %v632, %v633
    %v635 = vrot.slane %v634, 2
    %v636 = vadd.f32 %v634, %v635
    %v637 = vrot.slane %v636, 1
    %v638 = vadd.f32 %v636, %v637
    %v639 = vmul.f32 %v638, %v317
    %v640 = vadd.f32 %v639, 1e-05
    %v641 = vrsqrt.pop %v640
    %v642 = vmul.f32 %v365, %v641
    %v643 = vlaneseq
    %v644 = vshrl.u32 %v643, 7
    %v645 = vsub.s32 2, %v644
    %v646 = vrot.slane %v642, %v645
    %v647 = vmul.f32 %v626, %v646
    %v648 = vmul.f32 %v627, %v646
    %v649 = vlaneseq
    %v650 = vshrl.u32 %v649, 7
    %v651 = vsub.s32 3, %v650
    %v652 = vrot.slane %v365, %v651
    %v653 = vadd.f32 %v647, %v652
    %v654 = vadd.f32 %v648, %v652
    %655 = vst.msk [vmem:[#allocation2] sm:$0xff] %vm138, %v653
    %656 = vst.msk [vmem:[#allocation2 + $0x8] sm:$0xff] %vm138, %v654
    %v657 = vld [vmem:[%s6] sm:$0x3]
    %v659 = vsel %vm52, %v657, 0
    %661 = vmatprep.subr.mxu0 0.0
    %662 = vmatpush1.msra.mxu0 0.0
    %663 = vmatprep.subr.mxu0 0.0
    %664 = vmatpush1.msra.mxu0 0.0
    %665 = vmatprep.subr.mxu0 0.0
    %666 = vmatpush1.msra.mxu0 0.0
    %667 = vmatprep.subr.mxu0 0.0
    %668 = vmatpush1.msra.mxu0 0.0
    %669 = vmatprep.subr.mxu0 0.0
    %670 = vmatpush1.msra.mxu0 0.0
    %671 = vmatprep.subr.mxu0 0.0
    %672 = vmatpush1.msra.mxu0 0.0
    %673 = vmatprep.subr.mxu0 0.0
    %674 = vmatpush1.msra.mxu0 0.0
    %675 = vmatprep.subr.mxu0 0.0
    %676 = vmatpush1.msra.mxu0 0.0
    %677 = vmatprep.subr.mxu0 0.0
    %678 = vmatpush1.msra.mxu0 0.0
    %679 = vmatprep.subr.mxu0 0.0
    %680 = vmatpush1.msra.mxu0 0.0
    %681 = vmatprep.subr.mxu0 0.0
    %682 = vmatpush1.msra.mxu0 0.0
    %683 = vmatprep.subr.mxu0 0.0
    %684 = vmatpush1.msra.mxu0 0.0
    %685 = vmatprep.subr.mxu0 0.0
    %686 = vmatpush1.msra.mxu0 0.0
    %687 = vmatprep.subr.mxu0 0.0
    %688 = vmatpush1.msra.mxu0 0.0
    %689 = vmatprep.subr.mxu0 0.0
    %690 = vmatpush1.msra.mxu0 %v654
    %691 = vmatprep.subr.mxu0 0.0
    %692 = vmatpush1.msra.mxu0 %v653
    %693 = vmatprep.subr.mxu0 0.0
    %694 = vmatpush2.msra.mxu0 0.0
    %695 = vmatprep.subr.mxu0 0.0
    %696 = vmatpush2.msra.mxu0 0.0
    %697 = vmatprep.subr.mxu0 0.0
    %698 = vmatpush2.msra.mxu0 0.0
    %699 = vmatprep.subr.mxu0 0.0
    %700 = vmatpush2.msra.mxu0 0.0
    %701 = vmatprep.subr.mxu0 0.0
    %702 = vmatpush2.msra.mxu0 0.0
    %703 = vmatprep.subr.mxu0 0.0
    %704 = vmatpush2.msra.mxu0 0.0
    %705 = vmatprep.subr.mxu0 0.0
    %706 = vmatpush2.msra.mxu0 0.0
    %707 = vmatprep.subr.mxu0 0.0
    %708 = vmatpush2.msra.mxu0 0.0
    %709 = vmatprep.subr.mxu0 0.0
    %710 = vmatpush2.msra.mxu0 0.0
    %711 = vmatprep.subr.mxu0 0.0
    %712 = vmatpush2.msra.mxu0 0.0
    %713 = vmatprep.subr.mxu0 0.0
    %714 = vmatpush2.msra.mxu0 0.0
    %715 = vmatprep.subr.mxu0 0.0
    %716 = vmatpush2.msra.mxu0 0.0
    %717 = vmatprep.subr.mxu0 0.0
    %718 = vmatpush2.msra.mxu0 0.0
    %719 = vmatprep.subr.mxu0 0.0
    %720 = vmatpush2.msra.mxu0 0.0
    %721 = vmatprep.subr.mxu0 0.0
    %722 = vmatpush2.msra.mxu0 0.0
    %723 = vmatprep.subr.mxu0 0.0
    %724 = vmatpush2.msra.mxu0 0.0
    %725 = vmatprep.mubr.f32.mxu0 0.0
    %726 = vmatmul.mubr.f32.gmra.mxu0 %v659
    %v727 = vpop.f32.mrf.mxu0
    %v728 = vadd.f32 0.0, %v727
    %v729 = vpop.f32.mrf.mxu0
    %730 = vdwg.mxu0
    %v731 = vld [vmem:[%s7] sm:$0xff]
    %v732 = vld [vmem:[%s7 + $0x8] sm:$0xff]
    %v733 = vld [vmem:[%s7 + $0x10] sm:$0xff]
    %v734 = vld [vmem:[%s7 + $0x18] sm:$0xff]
    %v736 = vsel %vm138, %v728, 0
    %738 = vmatprep.subr.mxu0 0.0
    %739 = vmatpush1.msra.mxu0 0.0
    %740 = vmatprep.subr.mxu0 0.0
    %741 = vmatpush1.msra.mxu0 0.0
    %742 = vmatprep.subr.mxu0 0.0
    %743 = vmatpush1.msra.mxu0 0.0
    %744 = vmatprep.subr.mxu0 0.0
    %745 = vmatpush1.msra.mxu0 0.0
    %746 = vmatprep.subr.mxu0 0.0
    %747 = vmatpush1.msra.mxu0 0.0
    %748 = vmatprep.subr.mxu0 0.0
    %749 = vmatpush1.msra.mxu0 0.0
    %750 = vmatprep.subr.mxu0 0.0
    %751 = vmatpush1.msra.mxu0 0.0
    %752 = vmatprep.subr.mxu0 0.0
    %753 = vmatpush1.msra.mxu0 0.0
    %754 = vmatprep.subr.mxu0 0.0
    %755 = vmatpush1.msra.mxu0 0.0
    %756 = vmatprep.subr.mxu0 0.0
    %757 = vmatpush1.msra.mxu0 0.0
    %758 = vmatprep.subr.mxu0 0.0
    %759 = vmatpush1.msra.mxu0 0.0
    %760 = vmatprep.subr.mxu0 0.0
    %761 = vmatpush1.msra.mxu0 0.0
    %762 = vmatprep.subr.mxu0 0.0
    %763 = vmatpush1.msra.mxu0 %v734
    %764 = vmatprep.subr.mxu0 0.0
    %765 = vmatpush1.msra.mxu0 %v733
    %766 = vmatprep.subr.mxu0 0.0
    %767 = vmatpush1.msra.mxu0 %v732
    %768 = vmatprep.subr.mxu0 0.0
    %769 = vmatpush1.msra.mxu0 %v731
    %770 = vmatprep.subr.mxu0 0.0
    %771 = vmatpush2.msra.mxu0 0.0
    %772 = vmatprep.subr.mxu0 0.0
    %773 = vmatpush2.msra.mxu0 0.0
    %774 = vmatprep.subr.mxu0 0.0
    %775 = vmatpush2.msra.mxu0 0.0
    %776 = vmatprep.subr.mxu0 0.0
    %777 = vmatpush2.msra.mxu0 0.0
    %778 = vmatprep.subr.mxu0 0.0
    %779 = vmatpush2.msra.mxu0 0.0
    %780 = vmatprep.subr.mxu0 0.0
    %781 = vmatpush2.msra.mxu0 0.0
    %782 = vmatprep.subr.mxu0 0.0
    %783 = vmatpush2.msra.mxu0 0.0
    %784 = vmatprep.subr.mxu0 0.0
    %785 = vmatpush2.msra.mxu0 0.0
    %786 = vmatprep.subr.mxu0 0.0
    %787 = vmatpush2.msra.mxu0 0.0
    %788 = vmatprep.subr.mxu0 0.0
    %789 = vmatpush2.msra.mxu0 0.0
    %790 = vmatprep.subr.mxu0 0.0
    %791 = vmatpush2.msra.mxu0 0.0
    %792 = vmatprep.subr.mxu0 0.0
    %793 = vmatpush2.msra.mxu0 0.0
    %794 = vmatprep.subr.mxu0 0.0
    %795 = vmatpush2.msra.mxu0 0.0
    %796 = vmatprep.subr.mxu0 0.0
    %797 = vmatpush2.msra.mxu0 0.0
    %798 = vmatprep.subr.mxu0 0.0
    %799 = vmatpush2.msra.mxu0 0.0
    %800 = vmatprep.subr.mxu0 0.0
    %801 = vmatpush2.msra.mxu0 0.0
    %802 = vmatprep.mubr.f32.mxu0 0.0
    %803 = vmatmul.mubr.f32.gmra.mxu0 %v736
    %v804 = vpop.f32.mrf.mxu0
    %v805 = vadd.f32 0.0, %v804
    %v806 = vpop.f32.mrf.mxu0
    %807 = vdwg.mxu0
    %v808 = vmax.f32 %v805, 0.0
    %v809 = vmul.f32 %v808, %v808
    %vm810 = vcmask 123904
    %v811 = vsel %vm810, %v809, 0.0
    %812 = vadd.xlane.f32.xlu0 %v811
    %v813 = vpop.xlane.xlu0 %812
    %v814 = vrsqrt.pop %v813
    %v815 = vmul.f32 %v813, %v814
    %vm816 = vcmp.eq.f32.partialorder %v813, inf
    %v817 = vsel %vm816, %v813, %v815
    %vm818 = vcmp.eq.f32.partialorder %v813, 0.0
    %v819 = vand.u32 %v813, 2147483648
    %v820 = vsel %vm818, %v819, %v817
    %v821 = vmax.f32 %v820, 1e-12
    %v822 = vrcp.pop %v821
    %v823 = vmul.f32 %v808, %v822
    %v825 = vsel %vm52, %v823, 0
    %827 = vmatprep.subr.mxu0 0.0
    %828 = vmatpush1.xpose.msra.mxu0 0.0
    %829 = vmatprep.subr.mxu0 0.0
    %830 = vmatpush1.xpose.msra.mxu0 0.0
    %831 = vmatprep.subr.mxu0 0.0
    %832 = vmatpush1.xpose.msra.mxu0 0.0
    %833 = vmatprep.subr.mxu0 0.0
    %834 = vmatpush1.xpose.msra.mxu0 0.0
    %835 = vmatprep.subr.mxu0 0.0
    %836 = vmatpush1.xpose.msra.mxu0 0.0
    %837 = vmatprep.subr.mxu0 0.0
    %838 = vmatpush1.xpose.msra.mxu0 0.0
    %839 = vmatprep.subr.mxu0 0.0
    %840 = vmatpush1.xpose.msra.mxu0 0.0
    %841 = vmatprep.subr.mxu0 0.0
    %842 = vmatpush1.xpose.msra.mxu0 0.0
    %843 = vmatprep.subr.mxu0 0.0
    %844 = vmatpush1.xpose.msra.mxu0 0.0
    %845 = vmatprep.subr.mxu0 0.0
    %846 = vmatpush1.xpose.msra.mxu0 0.0
    %847 = vmatprep.subr.mxu0 0.0
    %848 = vmatpush1.xpose.msra.mxu0 0.0
    %849 = vmatprep.subr.mxu0 0.0
    %850 = vmatpush1.xpose.msra.mxu0 0.0
    %851 = vmatprep.subr.mxu0 0.0
    %852 = vmatpush1.xpose.msra.mxu0 0.0
    %853 = vmatprep.subr.mxu0 0.0
    %854 = vmatpush1.xpose.msra.mxu0 0.0
    %855 = vmatprep.subr.mxu0 0.0
    %856 = vmatpush1.xpose.msra.mxu0 0.0
    %857 = vmatprep.subr.mxu0 0.0
    %858 = vmatpush1.xpose.msra.mxu0 %v825
    %859 = vmatprep.subr.mxu0 0.0
    %860 = vmatpush2.xpose.msra.mxu0 0.0
    %861 = vmatprep.subr.mxu0 0.0
    %862 = vmatpush2.xpose.msra.mxu0 0.0
    %863 = vmatprep.subr.mxu0 0.0
    %864 = vmatpush2.xpose.msra.mxu0 0.0
    %865 = vmatprep.subr.mxu0 0.0
    %866 = vmatpush2.xpose.msra.mxu0 0.0
    %867 = vmatprep.subr.mxu0 0.0
    %868 = vmatpush2.xpose.msra.mxu0 0.0
    %869 = vmatprep.subr.mxu0 0.0
    %870 = vmatpush2.xpose.msra.mxu0 0.0
    %871 = vmatprep.subr.mxu0 0.0
    %872 = vmatpush2.xpose.msra.mxu0 0.0
    %873 = vmatprep.subr.mxu0 0.0
    %874 = vmatpush2.xpose.msra.mxu0 0.0
    %875 = vmatprep.subr.mxu0 0.0
    %876 = vmatpush2.xpose.msra.mxu0 0.0
    %877 = vmatprep.subr.mxu0 0.0
    %878 = vmatpush2.xpose.msra.mxu0 0.0
    %879 = vmatprep.subr.mxu0 0.0
    %880 = vmatpush2.xpose.msra.mxu0 0.0
    %881 = vmatprep.subr.mxu0 0.0
    %882 = vmatpush2.xpose.msra.mxu0 0.0
    %883 = vmatprep.subr.mxu0 0.0
    %884 = vmatpush2.xpose.msra.mxu0 0.0
    %885 = vmatprep.subr.mxu0 0.0
    %886 = vmatpush2.xpose.msra.mxu0 0.0
    %887 = vmatprep.subr.mxu0 0.0
    %888 = vmatpush2.xpose.msra.mxu0 0.0
    %889 = vmatprep.subr.mxu0 0.0
    %890 = vmatpush2.xpose.msra.mxu0 0.0
    %891 = vmatprep.mubr.f32.mxu0 0.0
    %892 = vmatmul.mubr.f32.gmra.mxu0 %v825
    %v893 = vpop.f32.mrf.mxu0
    %v894 = vadd.f32 0.0, %v893
    %v895 = vpop.f32.mrf.mxu0
    %896 = vdwg.mxu0
    %v897 = vsub.f32 %v894, 1.0
    %v898 = vmul.f32 %v897, 1.442695
    %v899 = vpow.pop %v898
    %vm900 = vcmask 9216
    %v901 = vsel %vm900, %v899, 0.0
    %902 = vadd.xlane.f32.xlu0 %v901
    %v903 = vpop.xlane.xlu0 %902
    %v904 = vrot.slane %v903, 4
    %v905 = vadd.f32 %v903, %v904
    %v906 = vrot.slane %v905, 2
    %v907 = vadd.f32 %v905, %v906
    %v908 = vrot.slane %v907, 1
    %v909 = vadd.f32 %v907, %v908
    %s910 = vtos %v909
    %v911 = vrcp.pop 4.0
    %s912 = vtos %v911
    %s913 = smul.f32 %s910, %s912
    %v914 = vstv %s913
    %v915 = vlog2.pop %v914
    %v916 = vmul.f32 %v915, 0.6931472
    %s917 = vtos %v916
    %v918 = vstv %s917
    %vm919 = vcmask 0
    %920 = vst.msk [vmem:[#allocation4] sm:$0x1] %vm919, %v918
    // Predicated region
    $region34: #{tpu_custom_call.1} parent=1 // pred_check
      _
    $region35: #{tpu_custom_call.1} parent=1 // pred_check_branch
      %922 = sbr.rel (0) target = $region37
    $region36: #{tpu_custom_call.1} parent=1 // pred_region
      %s924 = ssub.s32 256, 256
      %925 = vsyncadd [#allocation3], %s924
      %s926 = sshll.u32 [#allocation2], 4
      %s927 = int_to_ptr.vmem [resolvable:$true] %s926
      %932 = dma.vmem_to_hbm [thread:$0]  %s927, 256, %s8, [#allocation3], 128, 128, 8
    $region37: #{tpu_custom_call.1} parent=1 // pred_fallthru
      _
    // Predicated region
    $region38: #{tpu_custom_call.1} parent=1 // pred_check
      _
    $region39: #{tpu_custom_call.1} parent=1 // pred_check_branch
      %934 = sbr.rel (0) target = $region41
    $region40: #{tpu_custom_call.1} parent=1 // pred_region
      %s936 = ssub.s32 16, 16
      %937 = vsyncadd [#allocation5], %s936
      %s939 = sshll.u32 [#allocation4], 4
      %s940 = int_to_ptr.vmem [resolvable:$true] %s939
      %942 = dma.vmem_to_hbm [thread:$0]  %s940, 16, %s9, [#allocation5]
    $region41: #{tpu_custom_call.1} parent=1 // pred_fallthru
      _
    // Predicated region
    $region42: #{tpu_custom_call.1} parent=1 // pred_check
      _
    $region43: #{tpu_custom_call.1} parent=1 // pred_check_branch
      %944 = sbr.rel (0) target = $region45
    $region44: #{tpu_custom_call.1} parent=1 // pred_region
      %945 = dma.done [#allocation3], 256
    $region45: #{tpu_custom_call.1} parent=1 // pred_fallthru
      _
    // Predicated region
    $region46: #{tpu_custom_call.1} parent=1 // pred_check
      _
    $region47: #{tpu_custom_call.1} parent=1 // pred_check_branch
      %947 = sbr.rel (0) target = $region49
    $region48: #{tpu_custom_call.1} parent=1 // pred_region
      %948 = dma.done [#allocation5], 16
    $region49: #{tpu_custom_call.1} parent=1 // pred_fallthru
      _
    %949 = vsyncpa [#allocation3], 1
    %950 = vsyncpa [#allocation5], 1

</llo_original>
